<compile_context>
chip_gen: v6e
topology: v6e:2x2x1
jax: 0.10.0
libtpu: 0.0.40
codegen_flags: <defaults>
</compile_context>

<pallas_src>
import functools

import jax
import jax.numpy as jnp
from jax import lax
from jax.experimental import pallas as pl
from jax.experimental.pallas import tpu as pltpu


def _dyn_head_kernel(hw_pad, tok_ref, w_ref, bias_ref, o_ref):
    # tok_ref:  (TILE_M, D)              bf16  token embeddings (rows = (b,t,h,w))
    # w_ref:    (D, TILE_N)              bf16  pre-transposed head weight tile
    # bias_ref: (G, TILE_N) or (G,1,TILE_N) f32 fused per-(b,t) bias
    # o_ref:    (TILE_M, TILE_N)         out_dtype logits tile
    acc = jnp.dot(tok_ref[...], w_ref[...], preferred_element_type=jnp.float32)
    tile_m, tile_n = acc.shape
    g = tile_m // hw_pad
    bias = bias_ref[...]
    if bias.ndim == 2:                       # dense (G, TILE_N) bias layout
        bias = bias[:, None, :]
    # hw_pad is a multiple of 8, so this reshape is layout-preserving (no copy).
    acc = acc.reshape(g, hw_pad, tile_n) + bias
    o_ref[...] = acc.reshape(tile_m, tile_n).astype(o_ref.dtype)


def _choose_group(bt, rows_per_group, target_rows):
    """Largest exact divisor G of bt with G*rows_per_group <= target_rows,
    preferring choices that yield at least 2 row tiles (keeps both v7x TCs busy
    and guarantees M_pad == M, i.e. no post-kernel trim copy)."""
    divs = [g for g in range(1, bt + 1) if bt % g == 0]
    fit = [g for g in divs if g * rows_per_group <= target_rows] or [1]
    multi = [g for g in fit if bt // g >= 2]
    return max(multi) if multi else max(fit)


def _choose_tile_n(v_pad, tile_m, max_out_tile_bytes=4 << 20):
    for cand in (1024, 512, 256, 128):
        if v_pad % cand == 0 and tile_m * cand * 4 <= max_out_tile_bytes:
            return cand
    return 128


def dynamics_forward(tokens, act_id, params, *, tile_m_target=1024,
                     compute_dtype=jnp.bfloat16, out_dtype=jnp.float32):
    """JAX/Pallas equivalent of DynamicsModel.forward.

    tokens: (B, T, H, W) int32
    act_id: (B, T) int32
    returns (logits, logits[:, -1]) with logits of shape (B, T, H, W, V).
    Set out_dtype=jnp.bfloat16 to halve the logits HBM writeback if the
    consumer tolerates it (the kernel is write-bound at D=32).
    """
    tok_table = params["tok_emb"]    # (tok_vocab, D)
    act_table = params["act_emb"]    # (act_vocab, D)
    w_head = params["head_w"]        # (V, D)  nn.Linear layout
    b_head = params["head_b"]        # (V,)

    B, T, H, W = tokens.shape
    D = tok_table.shape[1]
    V = w_head.shape[0]
    HW = H * W
    BT = B * T

    # Per-(b,t) row stride, sublane aligned so the in-kernel reshape is free.
    HW_pad = ((HW + 7) // 8) * 8
    M_pad = BT * HW_pad
    V_pad = pl.cdiv(V, 128) * 128

    # ---- glue: gathers + tiny bias prologue stay in XLA -------------------
    # TODO(synk): Blueprint/parse_blueprint decoder layers are not defined in
    # the provided source, so self.dec_layers is treated as an identity stack.
    tok_idx = tokens.reshape(BT, HW)
    if HW_pad != HW:
        tok_idx = jnp.pad(tok_idx, ((0, 0), (0, HW_pad - HW)))   # pad rows -> id 0
    tok_idx = tok_idx.reshape(M_pad)
    # Cast the (tiny) table once; gather already lands in compute dtype, and the
    # row padding is folded into the gather -> no extra pass over (M, D).
    tok_c = jnp.take(tok_table.astype(compute_dtype), tok_idx, axis=0)   # (M_pad, D)

    # Fused bias:  act @ W^T + b  -> (BT, V), kept in f32 on purpose.
    act_e = jnp.take(act_table, act_id.reshape(BT), axis=0)              # (BT, D)
    act_bias = lax.dot_general(
        act_e, w_head, dimension_numbers=(((1,), (1,)), ((), ())),
        preferred_element_type=jnp.float32) + b_head[None, :]
    if V_pad != V:
        act_bias = jnp.pad(act_bias, ((0, 0), (0, V_pad - V)))

    # Pre-transpose the head weight once: canonical (K, N) RHS for the MXU.
    w_t = w_head.astype(compute_dtype).T                                  # (D, V)
    if V_pad != V:
        w_t = jnp.pad(w_t, ((0, 0), (0, V_pad - V)))

    # ---- tiling ------------------------------------------------------------
    G = _choose_group(BT, HW_pad, tile_m_target)
    TILE_M = G * HW_pad
    grid_i = BT // G                                   # exact -> M_pad == BT*HW_pad
    TILE_N = _choose_tile_n(V_pad, TILE_M)
    if grid_i * (V_pad // TILE_N) < 2 and TILE_N >= 256:
        TILE_N //= 2                                   # give both v7x TCs a step
    grid_j = V_pad // TILE_N

    dense_bias = (G % 8 == 0) or (G == BT)
    if dense_bias:
        bias_arr = act_bias                                             # (BT, V_pad)
        bias_spec = pl.BlockSpec((G, TILE_N), lambda j, i: (i, j))
    else:
        bias_arr = act_bias[:, None, :]                                 # (BT, 1, V_pad)
        bias_spec = pl.BlockSpec((G, 1, TILE_N), lambda j, i: (i, 0, j))

    out_bytes = jnp.dtype(out_dtype).itemsize
    bias_tile_rows = G if dense_bias else 8 * G
    vmem_need = 2 * (TILE_M * D * 2 + D * TILE_N * 2
                     + bias_tile_rows * TILE_N * 4
                     + TILE_M * TILE_N * out_bytes)
    vmem_limit = int(min(48 << 20, max(32 << 20, 2 * vmem_need)))

    # Grid order: column axis j OUTER, row axis i INNER -> the weight block
    # index (which only depends on j) is unchanged across the whole inner row
    # sweep, so Pallas skips its DMA (weight is effectively VMEM-resident).
    logits_flat = pl.pallas_call(
        functools.partial(_dyn_head_kernel, HW_pad),
        out_shape=jax.ShapeDtypeStruct((M_pad, V_pad), out_dtype),
        grid_spec=pltpu.PrefetchScalarGridSpec(
            num_scalar_prefetch=0,
            grid=(grid_j, grid_i),
            in_specs=[
                pl.BlockSpec((TILE_M, D), lambda j, i: (i, 0)),   # token rows
                pl.BlockSpec((D, TILE_N), lambda j, i: (0, j)),   # head weight tile
                bias_spec,                                         # fused bias
            ],
            out_specs=pl.BlockSpec((TILE_M, TILE_N), lambda j, i: (i, j)),
        ),
        compiler_params=pltpu.CompilerParams(
            dimension_semantics=("parallel", "parallel"),
            vmem_limit_bytes=vmem_limit),
    )(tok_c, w_t, bias_arr)

    # No trim copy unless padding was unavoidable (demo shapes: no padding).
    if HW_pad != HW or V_pad != V:
        logits = logits_flat.reshape(BT, HW_pad, V_pad)[:, :HW, :V]
        logits = logits.reshape(B, T, H, W, V)
    else:
        logits = logits_flat.reshape(B, T, H, W, V)
    # Kept for parity with the PyTorch module; callers that only need full
    # logits should ignore the second value (it is a 1/T-sized extra slab).
    return logits, logits[:, -1]


def _reference_forward(tokens, act_id, params):
    """Pure-JAX f32 reference matching the PyTorch semantics."""
    tok_e = jnp.take(params["tok_emb"], tokens, axis=0)              # (B,T,H,W,D)
    act_e = jnp.take(params["act_emb"], act_id, axis=0)              # (B,T,D)
    x = tok_e + act_e[:, :, None, None, :]
    logits = jnp.einsum("bthwd,vd->bthwv", x, params["head_w"],
                        preferred_element_type=jnp.float32) + params["head_b"]
    return logits, logits[:, -1]


if __name__ == "__main__":
    # small shapes consistent with the module
    B, T, H, W = 2, 8, 4, 4
    EMBED_DIM = 32
    TOK_VOCAB = 256
    ACT_VOCAB = 8

    key = jax.random.PRNGKey(0)
    k_tok, k_act, k_hw, k_hb, k_te, k_ae = jax.random.split(key, 6)

    params = {
        "tok_emb": jax.random.normal(k_te, (TOK_VOCAB, EMBED_DIM), jnp.float32) * 0.02,
        "act_emb": jax.random.normal(k_ae, (ACT_VOCAB, EMBED_DIM), jnp.float32) * 0.02,
        "head_w": jax.random.normal(k_hw, (TOK_VOCAB, EMBED_DIM), jnp.float32) * 0.02,
        "head_b": jax.random.normal(k_hb, (TOK_VOCAB,), jnp.float32) * 0.02,
    }

    tokens = jax.random.randint(k_tok, (B, T, H, W), 0, TOK_VOCAB, dtype=jnp.int32)
    act_id = jax.random.randint(k_act, (B, T), 0, ACT_VOCAB, dtype=jnp.int32)

    # f32 logits path (matches PyTorch output dtype).
    logits, last = jax.jit(dynamics_forward)(tokens, act_id, params)
    jax.block_until_ready((logits, last))

    ref_logits, ref_last = _reference_forward(tokens, act_id, params)
    assert logits.shape == (B, T, H, W, TOK_VOCAB)
    assert last.shape == (B, H, W, TOK_VOCAB)
    # bf16 GEMM operands with f32 accumulation -> loosened (still tight) tolerance.
    assert jnp.allclose(logits, ref_logits, atol=2e-3, rtol=1e-2)
    assert jnp.allclose(last, ref_last, atol=2e-3, rtol=1e-2)

    # Optional bf16-logits path (halves the write-bound HBM traffic).
    logits16, last16 = jax.jit(
        functools.partial(dynamics_forward, out_dtype=jnp.bfloat16))(tokens, act_id, params)
    jax.block_until_ready((logits16, last16))
    assert logits16.dtype == jnp.bfloat16
    assert jnp.allclose(logits16.astype(jnp.float32), ref_logits, atol=5e-3, rtol=5e-2)

    print("KERNEL_OK")
</pallas_src>

<mosaic_0001>
module attributes {stable_mosaic.version = 11 : i64} {
  func.func @_dyn_head_kernel(%arg0: i32, %arg1: i32, %arg2: memref<128x32xbf16, #tpu.memory_space<vmem>>, %arg3: memref<32x256xbf16, #tpu.memory_space<vmem>>, %arg4: memref<8x256xf32, #tpu.memory_space<vmem>>, %arg5: memref<128x256xf32, #tpu.memory_space<vmem>>) attributes {dimension_semantics = [#tpu.dimension_semantics<parallel>, #tpu.dimension_semantics<parallel>], iteration_bounds = array<i64: 1, 2>, scalar_prefetch = 0 : i64, scratch_operands = 0 : i64, tpu.core_type = #tpu.core_type<tc>, window_params = [{transform_indices = @transform_0, window_bounds = array<i64: 128, 32>}, {transform_indices = @transform_1, window_bounds = array<i64: 32, 256>}, {transform_indices = @transform_2, window_bounds = array<i64: 8, 256>}, {transform_indices = @transform_3, window_bounds = array<i64: 128, 256>}]} {
    %c0 = arith.constant 0 : index
    %c0_0 = arith.constant 0 : index
    %0 = vector.load %arg2[%c0, %c0_0] : memref<128x32xbf16, #tpu.memory_space<vmem>>, vector<128x32xbf16>
    %c0_1 = arith.constant 0 : index
    %c0_2 = arith.constant 0 : index
    %1 = vector.load %arg3[%c0_1, %c0_2] : memref<32x256xbf16, #tpu.memory_space<vmem>>, vector<32x256xbf16>
    %cst = arith.constant dense<0.000000e+00> : vector<128x256xf32>
    %2 = tpu.matmul %0, %1, %cst {dimension_numbers = #tpu.dot_dimension_numbers<[1], [0], [0], [1], [0, 0, 1, 1], [], []>} : vector<128x32xbf16>, vector<32x256xbf16>, vector<128x256xf32> -> vector<128x256xf32>
    %c0_3 = arith.constant 0 : index
    %c0_4 = arith.constant 0 : index
    %3 = vector.load %arg4[%c0_3, %c0_4] : memref<8x256xf32, #tpu.memory_space<vmem>>, vector<8x256xf32>
    %4 = vector.shape_cast %3 : vector<8x256xf32> to vector<8x1x256xf32>
    %5 = vector.shape_cast %2 : vector<128x256xf32> to vector<8x16x256xf32>
    %6 = vector.broadcast %4 : vector<8x1x256xf32> to vector<8x16x256xf32>
    %7 = arith.addf %5, %6 : vector<8x16x256xf32>
    %8 = vector.shape_cast %7 : vector<8x16x256xf32> to vector<128x256xf32>
    %c0_5 = arith.constant 0 : index
    %c0_6 = arith.constant 0 : index
    %9 = vector.load %arg5[%c0_5, %c0_6] : memref<128x256xf32, #tpu.memory_space<vmem>>, vector<128x256xf32>
    tpu.vector_store %arg5[%c0_5, %c0_6], %8 {strides = array<i32>} : memref<128x256xf32, #tpu.memory_space<vmem>>, vector<128x256xf32>,
    return
  }
  func.func @transform_0(%arg0: i32, %arg1: i32) -> (i32, i32) {
    %c0_i32 = arith.constant 0 : i32
    %c0_i32_0 = arith.constant 0 : i32
    return %arg1, %c0_i32 : i32, i32
  }
  func.func @transform_1(%arg0: i32, %arg1: i32) -> (i32, i32) {
    %c0_i32 = arith.constant 0 : i32
    %c0_i32_0 = arith.constant 0 : i32
    return %c0_i32, %arg0 : i32, i32
  }
  func.func @transform_2(%arg0: i32, %arg1: i32) -> (i32, i32) {
    %c0_i32 = arith.constant 0 : i32
    return %arg1, %arg0 : i32, i32
  }
  func.func @transform_3(%arg0: i32, %arg1: i32) -> (i32, i32) {
    %c0_i32 = arith.constant 0 : i32
    return %arg1, %arg0 : i32, i32
  }
}

</mosaic_0001>

<llo_original>
// kernel: dynamics_forward.1
$region0: #{dynamics_forward.1}
  #allocation0 [shape = 'u32[]', space=smem, size = 0x4, offset = 0x4, fixed_abs, tag = 'smem constant byte address 0x4 - core index']
  #allocation1 [shape = 'u32[144,128]{1,0:T(1,128)}', space=vmem, size = 0x12000, scoped, tag = 'internal scratch']
  %s0 = inlined_call_operand.vmem [shape: bf16[256,32], index: 0, kind: input, shape index: {}]
  %s1 = inlined_call_operand.vmem [shape: bf16[32,256], index: 1, kind: input, shape index: {}]
  %s2 = inlined_call_operand.vmem [shape: f32[16,256], index: 2, kind: input, shape index: {}]
  %s3 = inlined_call_operand.vmem [shape: f32[256,256], index: 3, kind: output, shape index: {}]
  %s4 = sld [smem:[#allocation0]]
  $region45: #{dynamics_forward.1} parent=0
    _
  %s6 = ssub.s32 1, %s4
  %s7 = scalar_select 0, %s6, %s4
  loop: start=0, step=1, limit=4
  $region2: #{dynamics_forward.1} parent=0 // loop_pre_header
    _
  $region3: #{dynamics_forward.1} parent=0 // loop_header
    %s9 = sphi 0, %s13
    %p10 = scmp.ge.s32.totalorder %s9, 4
    %s16 = sphi 0, %s28
    %s17 = sphi 0, %s24
    %s18 = sphi 0, %s16
    %s19 = sphi 0, %s17
    %s20 = sphi 0, %s18
    %s21 = sphi 0, %s19
    %s31 = sphi 0, %s33
    %s34 = sphi 0, %s31
    %s35 = sphi 0, %s34
    %s51 = sphi 0, %s35
    %s57 = sphi 0, %s59
    %s60 = sphi 0, %s57
    %s61 = sphi 0, %s60
    %s77 = sphi 0, %s61
    %s85 = sphi 0, %s87
    %s88 = sphi 0, %s85
    %s89 = sphi 0, %s88
    %s105 = sphi 0, %s89
    %s113 = sphi 0, %s115
    %s116 = sphi 0, %s113
    %s117 = sphi 0, %s116
    %s133 = sphi 0, %s117
  $region4: #{dynamics_forward.1} parent=0 // loop_header_branch
    %12 = sbr.rel (%p10) target = $region8
  $region5: #{dynamics_forward.1} parent=0 // loop_body
    %s14 = ssub.s32 %s9, 1
    %s15 = ssub.s32 %s9, 2
    %s22 = sadd.s32 1, %s17
    %p23 = scmp.ge.s32.totalorder %s22, 2
    %s24 = scalar_select %p23, 0, %s22
    %s25 = sadd.s32 1, %s16
    %s26 = scalar_select %p23, %s25, %s16
    %p27 = scmp.ge.s32.totalorder %s26, 1
    %s28 = scalar_select %p27, 0, %s26
    %s29 = ssub.s32 %s17, %s24
    %p30 = scmp.eq.s32.totalorder %s29, 0
    %s32 = sadd.s32 %s31, 1
    %s33 = scalar_select %p30, %s31, %s32
    %p36 = pneg %p30
    %p37 = scmp.eq.s32.totalorder %s9, 1
    %p38 = por %p36, %p37
    %p39 = scmp.ne.s32.totalorder %s31, %s34
    %p40 = scmp.eq.s32.totalorder %s9, 0
    %p41 = por %p39, %p40
    %p42 = scmp.ne.s32.totalorder %s31, %s34
    %p43 = scmp.eq.s32.totalorder %s14, 1
    %p44 = por %p42, %p43
    %p45 = scmp.ne.s32.totalorder %s34, %s35
    %p46 = scmp.eq.s32.totalorder %s14, 0
    %p47 = por %p45, %p46
    %p48 = scmp.ne.s32.totalorder %s34, %s35
    %p49 = scmp.eq.s32.totalorder %s15, 1
    %p50 = por %p48, %p49
    %p52 = scmp.ne.s32.totalorder %s35, %s51
    %p53 = scmp.eq.s32.totalorder %s15, 0
    %p54 = por %p52, %p53
    %s55 = ssub.s32 %s16, %s28
    %p56 = scmp.eq.s32.totalorder %s55, 0
    %s58 = sadd.s32 %s57, 1
    %s59 = scalar_select %p56, %s57, %s58
    %p62 = pneg %p56
    %p63 = scmp.eq.s32.totalorder %s9, 1
    %p64 = por %p62, %p63
    %p65 = scmp.ne.s32.totalorder %s57, %s60
    %p66 = scmp.eq.s32.totalorder %s9, 0
    %p67 = por %p65, %p66
    %p68 = scmp.ne.s32.totalorder %s57, %s60
    %p69 = scmp.eq.s32.totalorder %s14, 1
    %p70 = por %p68, %p69
    %p71 = scmp.ne.s32.totalorder %s60, %s61
    %p72 = scmp.eq.s32.totalorder %s14, 0
    %p73 = por %p71, %p72
    %p74 = scmp.ne.s32.totalorder %s60, %s61
    %p75 = scmp.eq.s32.totalorder %s15, 1
    %p76 = por %p74, %p75
    %p78 = scmp.ne.s32.totalorder %s61, %s77
    %p79 = scmp.eq.s32.totalorder %s15, 0
    %p80 = por %p78, %p79
    %s81 = ssub.s32 %s17, %s24
    %s82 = ssub.s32 %s16, %s28
    %s83 = sor.u32 %s81, %s82
    %p84 = scmp.eq.s32.totalorder %s83, 0
    %s86 = sadd.s32 %s85, 1
    %s87 = scalar_select %p84, %s85, %s86
    %p90 = pneg %p84
    %p91 = scmp.eq.s32.totalorder %s9, 1
    %p92 = por %p90, %p91
    %p93 = scmp.ne.s32.totalorder %s85, %s88
    %p94 = scmp.eq.s32.totalorder %s9, 0
    %p95 = por %p93, %p94
    %p96 = scmp.ne.s32.totalorder %s85, %s88
    %p97 = scmp.eq.s32.totalorder %s14, 1
    %p98 = por %p96, %p97
    %p99 = scmp.ne.s32.totalorder %s88, %s89
    %p100 = scmp.eq.s32.totalorder %s14, 0
    %p101 = por %p99, %p100
    %p102 = scmp.ne.s32.totalorder %s88, %s89
    %p103 = scmp.eq.s32.totalorder %s15, 1
    %p104 = por %p102, %p103
    %p106 = scmp.ne.s32.totalorder %s89, %s105
    %p107 = scmp.eq.s32.totalorder %s15, 0
    %p108 = por %p106, %p107
    %s109 = ssub.s32 %s17, %s24
    %s110 = ssub.s32 %s16, %s28
    %s111 = sor.u32 %s109, %s110
    %p112 = scmp.eq.s32.totalorder %s111, 0
    %s114 = sadd.s32 %s113, 1
    %s115 = scalar_select %p112, %s113, %s114
    %p118 = pneg %p112
    %p119 = scmp.eq.s32.totalorder %s9, 1
    %p120 = por %p118, %p119
    %p121 = scmp.ne.s32.totalorder %s113, %s116
    %p122 = scmp.eq.s32.totalorder %s9, 0
    %p123 = por %p121, %p122
    %p124 = scmp.ne.s32.totalorder %s113, %s116
    %p125 = scmp.eq.s32.totalorder %s14, 1
    %p126 = por %p124, %p125
    %p127 = scmp.ne.s32.totalorder %s116, %s117
    %p128 = scmp.eq.s32.totalorder %s14, 0
    %p129 = por %p127, %p128
    %p130 = scmp.ne.s32.totalorder %s116, %s117
    %p131 = scmp.eq.s32.totalorder %s15, 1
    %p132 = por %p130, %p131
    %p134 = scmp.ne.s32.totalorder %s117, %s133
    %p135 = scmp.eq.s32.totalorder %s15, 0
    %p136 = por %p134, %p135
    %p137 = scmp.le.s32.totalorder 1, %s9
    %p138 = scmp.lt.s32.totalorder %s9, 3
    %p139 = pnand %p137, %p138
    %p140 = pneg %p139
    // Predicated region
    $region9: #{dynamics_forward.1} parent=5 // pred_check
      _
    $region10: #{dynamics_forward.1} parent=5 // pred_check_branch
      %142 = sbr.rel (%p139) target = $region12
    $region11: #{dynamics_forward.1} parent=5 // pred_region
      %s143 = ssub.s32 %s9, 1
      // Predicated region
      $region13: #{dynamics_forward.1} parent=11 // pred_check
        %p144 = pneg %p73
      $region14: #{dynamics_forward.1} parent=11 // pred_check_branch
        %146 = sbr.rel (%p144) target = $region16
      $region15: #{dynamics_forward.1} parent=11 // pred_region
        %s147 = smul.u32 2, %s18
        %p148 = scmp.lt.s32.totalorder %s147, 1
        %s149 = scalar_select %p148, %s147, 1
        %s150 = smul.addr %s149, 4
        %s151 = scalar_lea.vmem %s1, %s150
        %s152 = smul.u32 2, %s18
      $region16: #{dynamics_forward.1} parent=11 // pred_fallthru
        _
    $region12: #{dynamics_forward.1} parent=5 // pred_fallthru
      _
    %p153 = scmp.lt.s32.totalorder %s9, 2
    // Predicated region
    $region17: #{dynamics_forward.1} parent=5 // pred_check
      %p154 = pneg %p153
    $region18: #{dynamics_forward.1} parent=5 // pred_check_branch
      %156 = sbr.rel (%p154) target = $region20
    $region19: #{dynamics_forward.1} parent=5 // pred_region
      // Predicated region
      $region21: #{dynamics_forward.1} parent=19 // pred_check
        %p157 = pneg %p41
      $region22: #{dynamics_forward.1} parent=19 // pred_check_branch
        %159 = sbr.rel (%p157) target = $region24
      $region23: #{dynamics_forward.1} parent=19 // pred_region
        %s160 = smul.u32 16, %s17
        %p161 = scmp.lt.s32.totalorder %s160, 31
        %s162 = scalar_select %p161, %s160, 31
        %s163 = smul.addr %s162, 4
        %s164 = scalar_lea.vmem %s0, %s163
        %s165 = smul.u32 16, %s17
      $region24: #{dynamics_forward.1} parent=19 // pred_fallthru
        _
      // Predicated region
      $region25: #{dynamics_forward.1} parent=19 // pred_check
        %p166 = pneg %p95
      $region26: #{dynamics_forward.1} parent=19 // pred_check_branch
        %168 = sbr.rel (%p166) target = $region28
      $region27: #{dynamics_forward.1} parent=19 // pred_region
        %s169 = smul.u32 2, %s16
        %p170 = scmp.lt.s32.totalorder %s17, 1
        %s171 = scalar_select %p170, %s17, 1
        %p172 = scmp.lt.s32.totalorder %s169, 1
        %s173 = scalar_select %p172, %s169, 1
        %s174 = smul.addr %s171, 2
        %s175 = sadd.s32 %s173, %s174
        %s176 = smul.addr %s175, 8
        %s177 = scalar_lea.vmem %s2, %s176
        %s178 = smul.u32 2, %s16
      $region28: #{dynamics_forward.1} parent=19 // pred_fallthru
        _
    $region20: #{dynamics_forward.1} parent=5 // pred_fallthru
      _
    %p179 = scmp.le.s32.totalorder 1, %s9
    %p180 = scmp.lt.s32.totalorder %s9, 3
    %p181 = pnand %p179, %p180
    %p182 = pneg %p181
    // Predicated region
    $region29: #{dynamics_forward.1} parent=5 // pred_check
      _
    $region30: #{dynamics_forward.1} parent=5 // pred_check_branch
      %184 = sbr.rel (%p181) target = $region32
    $region31: #{dynamics_forward.1} parent=5 // pred_region
      %s185 = ssub.s32 %s9, 1
      %s186 = smul.u32 16, %s19
      %p187 = scmp.lt.s32.totalorder %s186, 31
      %s188 = scalar_select %p187, %s186, 31
      %s189 = smul.addr %s188, 4
      %s190 = scalar_lea.vmem %s0, %s189
      %p191 = pneg %p47
      %p192 = pneg %p44
      %s193 = smul.u32 2, %s18
      %p194 = scmp.lt.s32.totalorder %s193, 1
      %s195 = scalar_select %p194, %s193, 1
      %s196 = smul.addr %s195, 4
      %s197 = scalar_lea.vmem %s1, %s196
      %p198 = pneg %p73
      %p199 = pneg %p70
      %s200 = smul.u32 2, %s18
      %p201 = scmp.lt.s32.totalorder %s19, 1
      %s202 = scalar_select %p201, %s19, 1
      %p203 = scmp.lt.s32.totalorder %s200, 1
      %s204 = scalar_select %p203, %s200, 1
      %s205 = smul.addr %s202, 2
      %s206 = sadd.s32 %s204, %s205
      %s207 = smul.addr %s206, 8
      %s208 = scalar_lea.vmem %s2, %s207
      %p209 = pneg %p101
      %p210 = pneg %p98
      %p211 = pneg %p129
      %p212 = pneg %p126
      %s213 = smul.u32 16, %s19
      %s214 = smul.u32 2, %s18
      %p215 = scmp.lt.s32.totalorder %s213, 31
      %s216 = scalar_select %p215, %s213, 31
      %p217 = scmp.lt.s32.totalorder %s214, 1
      %s218 = scalar_select %p217, %s214, 1
      %s219 = smul.addr %s216, 2
      %s220 = sadd.s32 %s218, %s219
      %s221 = smul.addr %s220, 8
      %s222 = scalar_lea.vmem %s3, %s221
      %s223 = smul.u32 16, %s19
      %p224 = scmp.lt.s32.totalorder %s223, 31
      %s225 = scalar_select %p224, %s223, 31
      %s226 = smul.addr %s225, 4
      %s227 = scalar_lea.vmem %s0, %s226
      %s228 = smul.u32 16, %s19
      %s229 = smul.u32 2, %s18
      %p230 = scmp.lt.s32.totalorder %s229, 1
      %s231 = scalar_select %p230, %s229, 1
      %s232 = smul.addr %s231, 4
      %s233 = scalar_lea.vmem %s1, %s232
      %s234 = smul.u32 2, %s18
      %s235 = smul.u32 2, %s18
      %p236 = scmp.lt.s32.totalorder %s19, 1
      %s237 = scalar_select %p236, %s19, 1
      %p238 = scmp.lt.s32.totalorder %s235, 1
      %s239 = scalar_select %p238, %s235, 1
      %s240 = smul.addr %s237, 2
      %s241 = sadd.s32 %s239, %s240
      %s242 = smul.addr %s241, 8
      %s243 = scalar_lea.vmem %s2, %s242
      %s244 = smul.u32 2, %s18
      %s245 = smul.u32 16, %s19
      %s246 = smul.u32 2, %s18
      %p247 = scmp.lt.s32.totalorder %s245, 31
      %s248 = scalar_select %p247, %s245, 31
      %p249 = scmp.lt.s32.totalorder %s246, 1
      %s250 = scalar_select %p249, %s246, 1
      %s251 = smul.addr %s248, 2
      %s252 = sadd.s32 %s250, %s251
      %s253 = smul.addr %s252, 8
      %s254 = scalar_lea.vmem %s3, %s253
      %s255 = smul.u32 16, %s19
      %s256 = smul.u32 2, %s18
      %v258 = vld [vmem:[%s227] sm:$0xf]
      %v259 = vld [vmem:[%s227 + $0x4] sm:$0xf]
      %v260 = vld [vmem:[%s227 + $0x8] sm:$0xf]
      %v261 = vld [vmem:[%s227 + $0xc] sm:$0xf]
      %v262 = vld [vmem:[%s227 + $0x10] sm:$0xf]
      %v263 = vld [vmem:[%s227 + $0x14] sm:$0xf]
      %v264 = vld [vmem:[%s227 + $0x18] sm:$0xf]
      %v265 = vld [vmem:[%s227 + $0x1c] sm:$0xf]
      %v266 = vld [vmem:[%s227 + $0x20] sm:$0xf]
      %v267 = vld [vmem:[%s227 + $0x24] sm:$0xf]
      %v268 = vld [vmem:[%s227 + $0x28] sm:$0xf]
      %v269 = vld [vmem:[%s227 + $0x2c] sm:$0xf]
      %v270 = vld [vmem:[%s227 + $0x30] sm:$0xf]
      %v271 = vld [vmem:[%s227 + $0x34] sm:$0xf]
      %v272 = vld [vmem:[%s227 + $0x38] sm:$0xf]
      %v273 = vld [vmem:[%s227 + $0x3c] sm:$0xf]
      %v274 = vld [vmem:[%s233] sm:$0xff]
      %v275 = vld [vmem:[%s233 + $0x8] sm:$0xff]
      %v276 = vld [vmem:[%s233 + $0x10] sm:$0xff]
      %v277 = vld [vmem:[%s233 + $0x18] sm:$0xff]
      %v294 = vunpack.c.l.b16 %v258
      %v295 = vunpack.c.l.b16 %v259
      %v296 = vunpack.c.l.b16 %v260
      %v297 = vunpack.c.l.b16 %v261
      %v298 = vunpack.c.l.b16 %v262
      %v299 = vunpack.c.l.b16 %v263
      %v300 = vunpack.c.l.b16 %v264
      %v301 = vunpack.c.l.b16 %v265
      %v302 = vunpack.c.l.b16 %v266
      %v303 = vunpack.c.l.b16 %v267
      %v304 = vunpack.c.l.b16 %v268
      %v305 = vunpack.c.l.b16 %v269
      %v306 = vunpack.c.l.b16 %v270
      %v307 = vunpack.c.l.b16 %v271
      %v308 = vunpack.c.l.b16 %v272
      %v309 = vunpack.c.l.b16 %v273
      %v310 = vpack.c.b16 %v295, %v294
      %v311 = vpack.c.b16 %v297, %v296
      %v312 = vpack.c.b16 %v299, %v298
      %v313 = vpack.c.b16 %v301, %v300
      %v314 = vpack.c.b16 %v303, %v302
      %v315 = vpack.c.b16 %v305, %v304
      %v316 = vpack.c.b16 %v307, %v306
      %v317 = vpack.c.b16 %v309, %v308
      %v322 = vunpack.c.l.b16 %v274
      %v323 = vunpack.c.h.b16 %v274
      %v324 = vunpack.c.l.b16 %v275
      %v325 = vunpack.c.h.b16 %v275
      %v326 = vunpack.c.l.b16 %v276
      %v327 = vunpack.c.h.b16 %v276
      %v328 = vunpack.c.l.b16 %v277
      %v329 = vunpack.c.h.b16 %v277
      %v330 = vpack.c.b16 %v324, %v322
      %v331 = vpack.c.b16 %v325, %v323
      %v332 = vpack.c.b16 %v328, %v326
      %v333 = vpack.c.b16 %v329, %v327
      %vm338 = vcmask 261120
      %v340 = vsel %vm338, %v310, 0
      %v343 = vsel %vm338, %v311, 0
      %v346 = vsel %vm338, %v312, 0
      %v349 = vsel %vm338, %v313, 0
      %v352 = vsel %vm338, %v314, 0
      %v355 = vsel %vm338, %v315, 0
      %v358 = vsel %vm338, %v316, 0
      %v361 = vsel %vm338, %v317, 0
      %363 = vmatprep.subr.bf16.mxu0 0
      %364 = vmatpush1.bf16.msra.mxu0 0
      %365 = vmatprep.subr.bf16.mxu0 0
      %366 = vmatpush1.bf16.msra.mxu0 0
      %367 = vmatprep.subr.bf16.mxu0 0
      %368 = vmatpush1.bf16.msra.mxu0 0
      %369 = vmatprep.subr.bf16.mxu0 0
      %370 = vmatpush1.bf16.msra.mxu0 0
      %371 = vmatprep.subr.bf16.mxu0 0
      %372 = vmatpush1.bf16.msra.mxu0 0
      %373 = vmatprep.subr.bf16.mxu0 0
      %374 = vmatpush1.bf16.msra.mxu0 0
      %375 = vmatprep.subr.bf16.mxu0 %v333
      %376 = vmatpush1.bf16.msra.mxu0 %v332
      %377 = vmatprep.subr.bf16.mxu0 %v331
      %378 = vmatpush1.bf16.msra.mxu0 %v330
      %379 = vmatprep.subr.bf16.mxu0 0
      %380 = vmatpush2.bf16.msra.mxu0 0
      %381 = vmatprep.subr.bf16.mxu0 0
      %382 = vmatpush2.bf16.msra.mxu0 0
      %383 = vmatprep.subr.bf16.mxu0 0
      %384 = vmatpush2.bf16.msra.mxu0 0
      %385 = vmatprep.subr.bf16.mxu0 0
      %386 = vmatpush2.bf16.msra.mxu0 0
      %387 = vmatprep.subr.bf16.mxu0 0
      %388 = vmatpush2.bf16.msra.mxu0 0
      %389 = vmatprep.subr.bf16.mxu0 0
      %390 = vmatpush2.bf16.msra.mxu0 0
      %391 = vmatprep.subr.bf16.mxu0 0
      %392 = vmatpush2.bf16.msra.mxu0 0
      %393 = vmatprep.subr.bf16.mxu0 0
      %394 = vmatpush2.bf16.msra.mxu0 0
      %395 = vmatprep.mubr.bf16.mxu0 0
      %396 = vmatmul.mubr.bf16.gmra.mxu0 %v340
      %v397 = vpop.f32.mrf.mxu0
      %v398 = vadd.f32 0.0, %v397
      %v399 = vpop.f32.mrf.mxu0
      %v400 = vadd.f32 0.0, %v399
      %v401 = vpop.f32.mrf.mxu0
      %v402 = vadd.f32 0.0, %v401
      %v403 = vpop.f32.mrf.mxu0
      %v404 = vadd.f32 0.0, %v403
      %405 = vmatprep.mubr.bf16.mxu0 0
      %406 = vmatmul.mubr.bf16.gmra.mxu0 %v343
      %v407 = vpop.f32.mrf.mxu0
      %v408 = vadd.f32 0.0, %v407
      %v409 = vpop.f32.mrf.mxu0
      %v410 = vadd.f32 0.0, %v409
      %v411 = vpop.f32.mrf.mxu0
      %v412 = vadd.f32 0.0, %v411
      %v413 = vpop.f32.mrf.mxu0
      %v414 = vadd.f32 0.0, %v413
      %415 = vmatprep.mubr.bf16.mxu0 0
      %416 = vmatmul.mubr.bf16.gmra.mxu0 %v346
      %v417 = vpop.f32.mrf.mxu0
      %v418 = vadd.f32 0.0, %v417
      %v419 = vpop.f32.mrf.mxu0
      %v420 = vadd.f32 0.0, %v419
      %v421 = vpop.f32.mrf.mxu0
      %v422 = vadd.f32 0.0, %v421
      %v423 = vpop.f32.mrf.mxu0
      %v424 = vadd.f32 0.0, %v423
      %425 = vmatprep.mubr.bf16.mxu0 0
      %426 = vmatmul.mubr.bf16.gmra.mxu0 %v349
      %v427 = vpop.f32.mrf.mxu0
      %v428 = vadd.f32 0.0, %v427
      %v429 = vpop.f32.mrf.mxu0
      %v430 = vadd.f32 0.0, %v429
      %v431 = vpop.f32.mrf.mxu0
      %v432 = vadd.f32 0.0, %v431
      %v433 = vpop.f32.mrf.mxu0
      %v434 = vadd.f32 0.0, %v433
      %435 = vmatprep.mubr.bf16.mxu0 0
      %436 = vmatmul.mubr.bf16.gmra.mxu0 %v352
      %v437 = vpop.f32.mrf.mxu0
      %v438 = vadd.f32 0.0, %v437
      %v439 = vpop.f32.mrf.mxu0
      %v440 = vadd.f32 0.0, %v439
      %v441 = vpop.f32.mrf.mxu0
      %v442 = vadd.f32 0.0, %v441
      %v443 = vpop.f32.mrf.mxu0
      %v444 = vadd.f32 0.0, %v443
      %445 = vmatprep.mubr.bf16.mxu0 0
      %446 = vmatmul.mubr.bf16.gmra.mxu0 %v355
      %v447 = vpop.f32.mrf.mxu0
      %v448 = vadd.f32 0.0, %v447
      %v449 = vpop.f32.mrf.mxu0
      %v450 = vadd.f32 0.0, %v449
      %v451 = vpop.f32.mrf.mxu0
      %v452 = vadd.f32 0.0, %v451
      %v453 = vpop.f32.mrf.mxu0
      %v454 = vadd.f32 0.0, %v453
      %455 = vmatprep.mubr.bf16.mxu0 0
      %456 = vmatmul.mubr.bf16.gmra.mxu0 %v358
      %v457 = vpop.f32.mrf.mxu0
      %v458 = vadd.f32 0.0, %v457
      %v459 = vpop.f32.mrf.mxu0
      %v460 = vadd.f32 0.0, %v459
      %v461 = vpop.f32.mrf.mxu0
      %v462 = vadd.f32 0.0, %v461
      %v463 = vpop.f32.mrf.mxu0
      %v464 = vadd.f32 0.0, %v463
      %465 = vmatprep.mubr.bf16.mxu0 0
      %466 = vmatmul.mubr.bf16.gmra.mxu0 %v361
      %v467 = vpop.f32.mrf.mxu0
      %v468 = vadd.f32 0.0, %v467
      %v469 = vpop.f32.mrf.mxu0
      %v470 = vadd.f32 0.0, %v469
      %v471 = vpop.f32.mrf.mxu0
      %v472 = vadd.f32 0.0, %v471
      %v473 = vpop.f32.mrf.mxu0
      %v474 = vadd.f32 0.0, %v473
      %475 = vdwg.mxu0
      %v476 = vld [vmem:[%s243] sm:$0xff]
      %v477 = vld [vmem:[%s243 + $0x8] sm:$0xff]
      %v480 = vcombine.low %v476, %v477
      %v481 = vcombine.high %v476, %v477
      %v483 = vunpack.c.l.s4 1966171168
      %v484 = vunpack.c.0.s8 %v483
      %v485 = vlaneseq
      %v486 = vshrl.u32 %v485, 7
      %v487 = vsub.s32 %v484, %v486
      %v488 = vrot.slane %v480, %v487
      %v490 = vunpack.c.l.s4 1966171168
      %v491 = vunpack.c.0.s8 %v490
      %v492 = vlaneseq
      %v493 = vshrl.u32 %v492, 7
      %v494 = vsub.s32 %v491, %v493
      %v495 = vrot.slane %v481, %v494
      %v496 = vcombine.high %v488, %v488
      %v497 = vcombine.high %v495, %v495
      %v499 = vunpack.c.l.s4 1966171168
      %v500 = vunpack.c.0.s8 %v499
      %v501 = vlaneseq
      %v502 = vshrl.u32 %v501, 7
      %v503 = vsub.s32 %v500, %v502
      %v504 = vrot.slane %v488, %v503
      %v506 = vunpack.c.l.s4 1966171168
      %v507 = vunpack.c.0.s8 %v506
      %v508 = vlaneseq
      %v509 = vshrl.u32 %v508, 7
      %v510 = vsub.s32 %v507, %v509
      %v511 = vrot.slane %v495, %v510
      %v513 = vunpack.c.l.s4 1966171168
      %v514 = vunpack.c.0.s8 %v513
      %v515 = vlaneseq
      %v516 = vshrl.u32 %v515, 7
      %v517 = vsub.s32 %v514, %v516
      %v518 = vrot.slane %v496, %v517
      %v520 = vunpack.c.l.s4 1966171168
      %v521 = vunpack.c.0.s8 %v520
      %v522 = vlaneseq
      %v523 = vshrl.u32 %v522, 7
      %v524 = vsub.s32 %v521, %v523
      %v525 = vrot.slane %v497, %v524
      %v526 = vcombine.high %v504, %v504
      %v527 = vcombine.high %v511, %v511
      %v528 = vcombine.high %v518, %v518
      %v529 = vcombine.high %v525, %v525
      %v530 = vlaneseq
      %v531 = vshrl.u32 %v530, 7
      %v532 = vsub.s32 0, %v531
      %v533 = vrot.slane %v504, %v532
      %v534 = vlaneseq
      %v535 = vshrl.u32 %v534, 7
      %v536 = vsub.s32 1, %v535
      %v537 = vrot.slane %v504, %v536
      %v538 = vlaneseq
      %v539 = vshrl.u32 %v538, 7
      %v540 = vsub.s32 0, %v539
      %v541 = vrot.slane %v518, %v540
      %v542 = vlaneseq
      %v543 = vshrl.u32 %v542, 7
      %v544 = vsub.s32 1, %v543
      %v545 = vrot.slane %v518, %v544
      %v546 = vlaneseq
      %v547 = vshrl.u32 %v546, 7
      %v548 = vsub.s32 0, %v547
      %v549 = vrot.slane %v526, %v548
      %v550 = vlaneseq
      %v551 = vshrl.u32 %v550, 7
      %v552 = vsub.s32 1, %v551
      %v553 = vrot.slane %v526, %v552
      %v554 = vlaneseq
      %v555 = vshrl.u32 %v554, 7
      %v556 = vsub.s32 0, %v555
      %v557 = vrot.slane %v528, %v556
      %v558 = vlaneseq
      %v559 = vshrl.u32 %v558, 7
      %v560 = vsub.s32 1, %v559
      %v561 = vrot.slane %v528, %v560
      %v562 = vlaneseq
      %v563 = vshrl.u32 %v562, 7
      %v564 = vsub.s32 0, %v563
      %v565 = vrot.slane %v511, %v564
      %v566 = vlaneseq
      %v567 = vshrl.u32 %v566, 7
      %v568 = vsub.s32 1, %v567
      %v569 = vrot.slane %v511, %v568
      %v570 = vlaneseq
      %v571 = vshrl.u32 %v570, 7
      %v572 = vsub.s32 0, %v571
      %v573 = vrot.slane %v525, %v572
      %v574 = vlaneseq
      %v575 = vshrl.u32 %v574, 7
      %v576 = vsub.s32 1, %v575
      %v577 = vrot.slane %v525, %v576
      %v578 = vlaneseq
      %v579 = vshrl.u32 %v578, 7
      %v580 = vsub.s32 0, %v579
      %v581 = vrot.slane %v527, %v580
      %v582 = vlaneseq
      %v583 = vshrl.u32 %v582, 7
      %v584 = vsub.s32 1, %v583
      %v585 = vrot.slane %v527, %v584
      %v586 = vlaneseq
      %v587 = vshrl.u32 %v586, 7
      %v588 = vsub.s32 0, %v587
      %v589 = vrot.slane %v529, %v588
      %v590 = vlaneseq
      %v591 = vshrl.u32 %v590, 7
      %v592 = vsub.s32 1, %v591
      %v593 = vrot.slane %v529, %v592
      %v610 = vadd.f32 %v398, %v533
      %v611 = vadd.f32 %v400, %v537
      %v612 = vadd.f32 %v402, %v533
      %v613 = vadd.f32 %v404, %v537
      %v614 = vadd.f32 %v408, %v541
      %v615 = vadd.f32 %v410, %v545
      %v616 = vadd.f32 %v412, %v541
      %v617 = vadd.f32 %v414, %v545
      %v618 = vadd.f32 %v418, %v549
      %v619 = vadd.f32 %v420, %v553
      %v620 = vadd.f32 %v422, %v549
      %v621 = vadd.f32 %v424, %v553
      %v622 = vadd.f32 %v428, %v557
      %v623 = vadd.f32 %v430, %v561
      %v624 = vadd.f32 %v432, %v557
      %v625 = vadd.f32 %v434, %v561
      %v626 = vadd.f32 %v438, %v565
      %v627 = vadd.f32 %v440, %v569
      %v628 = vadd.f32 %v442, %v565
      %v629 = vadd.f32 %v444, %v569
      %v630 = vadd.f32 %v448, %v573
      %v631 = vadd.f32 %v450, %v577
      %v632 = vadd.f32 %v452, %v573
      %v633 = vadd.f32 %v454, %v577
      %v634 = vadd.f32 %v458, %v581
      %v635 = vadd.f32 %v460, %v585
      %v636 = vadd.f32 %v462, %v581
      %v637 = vadd.f32 %v464, %v585
      %v638 = vadd.f32 %v468, %v589
      %v639 = vadd.f32 %v470, %v593
      %v640 = vadd.f32 %v472, %v589
      %v641 = vadd.f32 %v474, %v593
      %642 = vst [vmem:[%s254] sm:$0xff] %v610
      %643 = vst [vmem:[%s254 + $0x8] sm:$0xff] %v611
      %644 = vst [vmem:[%s254 + $0x10] sm:$0xff] %v612
      %645 = vst [vmem:[%s254 + $0x18] sm:$0xff] %v613
      %646 = vst [vmem:[%s254 + $0x20] sm:$0xff] %v614
      %647 = vst [vmem:[%s254 + $0x28] sm:$0xff] %v615
      %648 = vst [vmem:[%s254 + $0x30] sm:$0xff] %v616
      %649 = vst [vmem:[%s254 + $0x38] sm:$0xff] %v617
      %650 = vst [vmem:[%s254 + $0x40] sm:$0xff] %v618
      %651 = vst [vmem:[%s254 + $0x48] sm:$0xff] %v619
      %652 = vst [vmem:[%s254 + $0x50] sm:$0xff] %v620
      %653 = vst [vmem:[%s254 + $0x58] sm:$0xff] %v621
      %654 = vst [vmem:[%s254 + $0x60] sm:$0xff] %v622
      %655 = vst [vmem:[%s254 + $0x68] sm:$0xff] %v623
      %656 = vst [vmem:[%s254 + $0x70] sm:$0xff] %v624
      %657 = vst [vmem:[%s254 + $0x78] sm:$0xff] %v625
      %658 = vst [vmem:[%s254 + $0x80] sm:$0xff] %v626
      %659 = vst [vmem:[%s254 + $0x88] sm:$0xff] %v627
      %660 = vst [vmem:[%s254 + $0x90] sm:$0xff] %v628
      %661 = vst [vmem:[%s254 + $0x98] sm:$0xff] %v629
      %662 = vst [vmem:[%s254 + $0xa0] sm:$0xff] %v630
      %663 = vst [vmem:[%s254 + $0xa8] sm:$0xff] %v631
      %664 = vst [vmem:[%s254 + $0xb0] sm:$0xff] %v632
      %665 = vst [vmem:[%s254 + $0xb8] sm:$0xff] %v633
      %666 = vst [vmem:[%s254 + $0xc0] sm:$0xff] %v634
      %667 = vst [vmem:[%s254 + $0xc8] sm:$0xff] %v635
      %668 = vst [vmem:[%s254 + $0xd0] sm:$0xff] %v636
      %669 = vst [vmem:[%s254 + $0xd8] sm:$0xff] %v637
      %670 = vst [vmem:[%s254 + $0xe0] sm:$0xff] %v638
      %671 = vst [vmem:[%s254 + $0xe8] sm:$0xff] %v639
      %672 = vst [vmem:[%s254 + $0xf0] sm:$0xff] %v640
      %673 = vst [vmem:[%s254 + $0xf8] sm:$0xff] %v641
      %s674 = smul.u32 16, %s19
      %s675 = smul.u32 2, %s18
      %p676 = scmp.lt.s32.totalorder %s674, 31
      %s677 = scalar_select %p676, %s674, 31
      %p678 = scmp.lt.s32.totalorder %s675, 1
      %s679 = scalar_select %p678, %s675, 1
      %s680 = smul.addr %s677, 2
      %s681 = sadd.s32 %s679, %s680
      %s682 = smul.addr %s681, 8
      %s683 = scalar_lea.vmem %s3, %s682
      // Predicated region
      $region33: #{dynamics_forward.1} parent=31 // pred_check
        %p684 = pneg %p126
      $region34: #{dynamics_forward.1} parent=31 // pred_check_branch
        %686 = sbr.rel (%p684) target = $region36
      $region35: #{dynamics_forward.1} parent=31 // pred_region
        %s687 = smul.u32 16, %s19
        %s688 = smul.u32 2, %s18
      $region36: #{dynamics_forward.1} parent=31 // pred_fallthru
        _
    $region32: #{dynamics_forward.1} parent=5 // pred_fallthru
      _
    %p689 = scmp.le.s32.totalorder 2, %s9
    // Predicated region
    $region37: #{dynamics_forward.1} parent=5 // pred_check
      %p690 = pneg %p689
    $region38: #{dynamics_forward.1} parent=5 // pred_check_branch
      %692 = sbr.rel (%p690) target = $region40
    $region39: #{dynamics_forward.1} parent=5 // pred_region
      %s693 = ssub.s32 %s9, 2
      // Predicated region
      $region41: #{dynamics_forward.1} parent=39 // pred_check
        %p694 = pneg %p132
      $region42: #{dynamics_forward.1} parent=39 // pred_check_branch
        %696 = sbr.rel (%p694) target = $region44
      $region43: #{dynamics_forward.1} parent=39 // pred_region
        %s697 = smul.u32 16, %s21
        %s698 = smul.u32 2, %s20
        %p699 = scmp.lt.s32.totalorder %s697, 31
        %s700 = scalar_select %p699, %s697, 31
        %p701 = scmp.lt.s32.totalorder %s698, 1
        %s702 = scalar_select %p701, %s698, 1
        %s703 = smul.addr %s700, 2
        %s704 = sadd.s32 %s702, %s703
        %s705 = smul.addr %s704, 8
        %s706 = scalar_lea.vmem %s3, %s705
      $region44: #{dynamics_forward.1} parent=39 // pred_fallthru
        _
    $region40: #{dynamics_forward.1} parent=5 // pred_fallthru
      _
  $region6: #{dynamics_forward.1} parent=0 // loop_footer
    %s13 = sadd.s32 1, %s9
  $region7: #{dynamics_forward.1} parent=0 // loop_footer_branch
    %8 = sbr.rel target = $region3
  $region8: #{dynamics_forward.1} parent=0 // loop_exit
    _

</llo_original>
